<compile_context>
chip_gen: v5e
topology: v5e:2x2
jax: 0.10.0
libtpu: 0.0.40
codegen_flags: <defaults>
</compile_context>

<pallas_src>
import math
from functools import partial

import jax
import jax.numpy as jnp
from jax.experimental import pallas as pl
from jax.experimental.pallas import tpu as pltpu


def _round_up(x, m):
    return (x + m - 1) // m * m


def _choose_batch_tile(B, S):
    # Target >= 256 MXU rows (TB*S) per grid step, capped at the batch size.
    tb = max(1, min(B, (256 + S - 1) // S))
    # Prefer >= 2 grid steps (v7x has 2 TensorCores) as long as each step
    # still keeps >= 128 rows on the MXU M dimension.
    if B <= tb and B > 1:
        half = (B + 1) // 2
        if half * S >= 128:
            tb = half
    return tb


def _gnn_cell_kernel(A_in_ref, A_out_ref, h_ref,
                     w_ei_ref, w_eo_ref, w_ih_a_ref, w_ih_b_ref, w_hh_ref,
                     b_ei_ref, b_eo_ref, b_iah_ref, b_oah_ref,
                     b_ih_ref, b_hh_ref,
                     out_ref, *, step, TB, S, Hp, compute_dtype):
    cd = compute_dtype

    # Loop-invariant operands: loaded (and cast) once, outside the step loop.
    A_in = A_in_ref[...].astype(cd)       # [TB, S, S]
    A_out = A_out_ref[...].astype(cd)     # [TB, S, S]
    w_ei = w_ei_ref[...]                  # [Hp, Hp]   (already [in, out], cd)
    w_eo = w_eo_ref[...]                  # [Hp, Hp]
    w_ih_a = w_ih_a_ref[...]              # [Hp, 3Hp]  (gate blocks 128-aligned)
    w_ih_b = w_ih_b_ref[...]              # [Hp, 3Hp]
    w_hh = w_hh_ref[...]                  # [Hp, 3Hp]
    b_ei = b_ei_ref[...]                  # [1, Hp]    (f32)
    b_eo = b_eo_ref[...]
    b_iah = b_iah_ref[...]
    b_oah = b_oah_ref[...]
    b_ih = b_ih_ref[...]                  # [1, 3Hp]
    b_hh = b_hh_ref[...]                  # [1, 3Hp]

    def mm(a, b):
        return jnp.dot(a.astype(cd), b.astype(cd),
                       preferred_element_type=jnp.float32)

    def bmm(a, b):
        return jnp.einsum('bij,bjh->bih', a.astype(cd), b.astype(cd),
                          preferred_element_type=jnp.float32)

    def cell(h_flat):                                   # h_flat: [TB*S, Hp] f32
        edge_in = mm(h_flat, w_ei) + b_ei               # [TB*S, Hp]
        edge_out = mm(h_flat, w_eo) + b_eo
        prop_in = bmm(A_in, edge_in.reshape(TB, S, Hp)).reshape(TB * S, Hp) + b_iah
        prop_out = bmm(A_out, edge_out.reshape(TB, S, Hp)).reshape(TB * S, Hp) + b_oah
        gi = mm(prop_in, w_ih_a) + mm(prop_out, w_ih_b) + b_ih   # [TB*S, 3Hp]
        gh = mm(h_flat, w_hh) + b_hh                             # [TB*S, 3Hp]
        # Gate slices are at 128-aligned offsets (Hp is a multiple of 128).
        i_r, i_i, i_n = gi[:, :Hp], gi[:, Hp:2 * Hp], gi[:, 2 * Hp:]
        h_r, h_i, h_n = gh[:, :Hp], gh[:, Hp:2 * Hp], gh[:, 2 * Hp:]
        resetgate = jax.nn.sigmoid(i_r + h_r)           # gating stays f32
        inputgate = jax.nn.sigmoid(i_i + h_i)
        newgate = jnp.tanh(i_n + resetgate * h_n)
        return newgate + inputgate * (h_flat - newgate)

    h = h_ref[...].astype(jnp.float32).reshape(TB * S, Hp)
    if step <= 2:
        for _ in range(step):                           # tiny static unroll
            h = cell(h)
    else:
        h = jax.lax.fori_loop(0, step, lambda _, hh: cell(hh), h)

    out_ref[...] = h.reshape(TB, S, Hp).astype(out_ref.dtype)


def gnn_forward_pallas(A, hidden, params, step, *, compute_dtype=jnp.float32):
    # compute_dtype=jnp.bfloat16 is a valid choice on v6e/v7x once MXU-bound;
    # accumulation stays f32 via preferred_element_type, gating stays f32.
    B, S, H = hidden.shape
    assert A.shape == (B, S, 2 * S)
    Hp = _round_up(H, 128)
    TB = _choose_batch_tile(B, S)
    Bp = _round_up(B, TB)

    # ---- wrapper-side layout plumbing (one-time, outside the hot kernel) ----
    A_in = A[:, :, :S]
    A_out = A[:, :, S:2 * S]
    pad_batch = Bp - B
    if pad_batch:
        A_in = jnp.pad(A_in, ((0, pad_batch), (0, 0), (0, 0)))
        A_out = jnp.pad(A_out, ((0, pad_batch), (0, 0), (0, 0)))
    hidden_p = jnp.pad(hidden, ((0, pad_batch), (0, 0), (0, Hp - H)))

    def pad_w(w_t):          # [in<=Hp, out<=Hp] -> [Hp, Hp], zero padded
        return jnp.pad(w_t, ((0, Hp - w_t.shape[0]), (0, Hp - w_t.shape[1])))

    def pad_b(b):            # [..., H] -> [1, Hp], zero padded
        b2 = b.reshape(1, -1)
        return jnp.pad(b2, ((0, 0), (0, Hp - b2.shape[1])))

    w_ih = params["w_ih"]    # [3H, 2H]  (PyTorch [out, in])
    w_hh = params["w_hh"]    # [3H, H]

    # Pre-transpose to [in, out]; re-pack the three gates along the output dim
    # so each gate block starts at a 128-aligned lane offset.
    w_ei = pad_w(params["w_edge_in"].T)
    w_eo = pad_w(params["w_edge_out"].T)
    w_ih_a = jnp.concatenate(
        [pad_w(w_ih[g * H:(g + 1) * H, :H].T) for g in range(3)], axis=1)   # [Hp, 3Hp]
    w_ih_b = jnp.concatenate(
        [pad_w(w_ih[g * H:(g + 1) * H, H:].T) for g in range(3)], axis=1)   # [Hp, 3Hp]
    w_hh_t = jnp.concatenate(
        [pad_w(w_hh[g * H:(g + 1) * H, :].T) for g in range(3)], axis=1)    # [Hp, 3Hp]

    b_ih_flat = params["b_ih"].reshape(-1)
    b_hh_flat = params["b_hh"].reshape(-1)
    b_ei = pad_b(params["b_edge_in"])
    b_eo = pad_b(params["b_edge_out"])
    b_iah = pad_b(params["b_iah"])
    b_oah = pad_b(params["b_oah"])
    b_ih = jnp.concatenate(
        [pad_b(b_ih_flat[g * H:(g + 1) * H]) for g in range(3)], axis=1)    # [1, 3Hp]
    b_hh = jnp.concatenate(
        [pad_b(b_hh_flat[g * H:(g + 1) * H]) for g in range(3)], axis=1)    # [1, 3Hp]

    # Weights may be pre-cast for the MXU; biases stay f32 (added post-matmul).
    w_args = tuple(w.astype(compute_dtype)
                   for w in (w_ei, w_eo, w_ih_a, w_ih_b, w_hh_t))
    b_args = (b_ei, b_eo, b_iah, b_oah, b_ih, b_hh)

    def batch_spec(shape):
        nd = len(shape)
        return pl.BlockSpec(shape, lambda b: (b,) + (0,) * (nd - 1))

    def full_spec(arr):
        nd = arr.ndim
        return pl.BlockSpec(arr.shape, lambda b: (0,) * nd)

    kernel = partial(_gnn_cell_kernel, step=step, TB=TB, S=S, Hp=Hp,
                     compute_dtype=compute_dtype)

    flops = step * Bp * (22 * S * Hp * Hp + 4 * S * S * Hp)
    transcendentals = step * Bp * S * 3 * Hp
    bytes_accessed = int(
        4 * (A_in.size + A_out.size + 2 * hidden_p.size)
        + sum(int(w.size) * w.dtype.itemsize for w in w_args)
        + 4 * sum(int(b.size) for b in b_args))

    out = pl.pallas_call(
        kernel,
        out_shape=jax.ShapeDtypeStruct((Bp, S, Hp), hidden.dtype),
        grid=(Bp // TB,),
        in_specs=[batch_spec((TB, S, S)),      # A_in
                  batch_spec((TB, S, S)),      # A_out
                  batch_spec((TB, S, Hp))]     # hidden
                 + [full_spec(w) for w in w_args]
                 + [full_spec(b) for b in b_args],
        out_specs=batch_spec((TB, S, Hp)),
        compiler_params=pltpu.CompilerParams(
            dimension_semantics=("parallel",)),
        cost_estimate=pl.CostEstimate(
            flops=flops, transcendentals=transcendentals,
            bytes_accessed=bytes_accessed),
    )(A_in, A_out, hidden_p, *w_args, *b_args)

    return out[:B, :, :H]


def g3sr_mean_forward(inputs, A, params, step, *, compute_dtype=jnp.float32):
    # Embedding lookup (glue, plain JAX gather).
    hidden = params["g_embedding"][inputs] + params["l_embedding"][inputs]  # [B,S,H]
    return gnn_forward_pallas(A, hidden, params, step, compute_dtype=compute_dtype)


def init_params(key, n_node, hidden_size):
    stdv = 1.0 / math.sqrt(hidden_size)
    H = hidden_size
    shapes = {
        "g_embedding": (n_node, H),
        "l_embedding": (n_node, H),
        "w_ih": (3 * H, 2 * H),
        "w_hh": (3 * H, H),
        "b_ih": (1, 3 * H),
        "b_hh": (1, 3 * H),
        "b_iah": (1, H),
        "b_oah": (1, H),
        "w_edge_in": (H, H),
        "b_edge_in": (1, H),
        "w_edge_out": (H, H),
        "b_edge_out": (1, H),
        # linear_edge_f exists in the PyTorch module but is unused in forward.
    }
    params = {}
    keys = jax.random.split(key, len(shapes))
    for k, (name, shape) in zip(keys, shapes.items()):
        params[name] = jax.random.uniform(
            k, shape, dtype=jnp.float32, minval=-stdv, maxval=stdv)
    return params


if __name__ == "__main__":
    B, S, H = 2, 8, 32
    n_node = 50
    step = 1

    key = jax.random.PRNGKey(0)
    k_param, k_in, k_adj = jax.random.split(key, 3)

    params = init_params(k_param, n_node, H)

    inputs = jax.random.randint(k_in, (B, S), 0, n_node, dtype=jnp.int32)
    # Normalized-ish adjacency, [B, S, 2S] like the PyTorch session graph.
    A = jax.random.uniform(k_adj, (B, S, 2 * S), dtype=jnp.float32)

    out = g3sr_mean_forward(inputs, A, params, step)
    jax.block_until_ready(out)
    assert out.shape == (B, S, H)
    assert bool(jnp.all(jnp.isfinite(out)))
    print("KERNEL_OK")
</pallas_src>

<mosaic_0001>
module attributes {stable_mosaic.version = 11 : i64} {
  func.func @_gnn_cell_kernel(%arg0: i32, %arg1: memref<2x8x8xf32, #tpu.memory_space<vmem>>, %arg2: memref<2x8x8xf32, #tpu.memory_space<vmem>>, %arg3: memref<2x8x128xf32, #tpu.memory_space<vmem>>, %arg4: memref<128x128xf32, #tpu.memory_space<vmem>>, %arg5: memref<128x128xf32, #tpu.memory_space<vmem>>, %arg6: memref<128x384xf32, #tpu.memory_space<vmem>>, %arg7: memref<128x384xf32, #tpu.memory_space<vmem>>, %arg8: memref<128x384xf32, #tpu.memory_space<vmem>>, %arg9: memref<1x128xf32, #tpu.memory_space<vmem>>, %arg10: memref<1x128xf32, #tpu.memory_space<vmem>>, %arg11: memref<1x128xf32, #tpu.memory_space<vmem>>, %arg12: memref<1x128xf32, #tpu.memory_space<vmem>>, %arg13: memref<1x384xf32, #tpu.memory_space<vmem>>, %arg14: memref<1x384xf32, #tpu.memory_space<vmem>>, %arg15: memref<2x8x128xf32, #tpu.memory_space<vmem>>) attributes {dimension_semantics = [#tpu.dimension_semantics<parallel>], iteration_bounds = array<i64: 1>, scalar_prefetch = 0 : i64, scratch_operands = 0 : i64, tpu.core_type = #tpu.core_type<tc>, window_params = [{transform_indices = @transform_0, window_bounds = array<i64: 2, 8, 8>}, {transform_indices = @transform_1, window_bounds = array<i64: 2, 8, 8>}, {transform_indices = @transform_2, window_bounds = array<i64: 2, 8, 128>}, {pipeline_mode = #tpu.pipeline_mode<synchronous>, transform_indices = @transform_3, window_bounds = array<i64: 128, 128>}, {pipeline_mode = #tpu.pipeline_mode<synchronous>, transform_indices = @transform_4, window_bounds = array<i64: 128, 128>}, {pipeline_mode = #tpu.pipeline_mode<synchronous>, transform_indices = @transform_5, window_bounds = array<i64: 128, 384>}, {pipeline_mode = #tpu.pipeline_mode<synchronous>, transform_indices = @transform_6, window_bounds = array<i64: 128, 384>}, {pipeline_mode = #tpu.pipeline_mode<synchronous>, transform_indices = @transform_7, window_bounds = array<i64: 128, 384>}, {pipeline_mode = #tpu.pipeline_mode<synchronous>, transform_indices = @transform_8, window_bounds = array<i64: 1, 128>}, {pipeline_mode = #tpu.pipeline_mode<synchronous>, transform_indices = @transform_9, window_bounds = array<i64: 1, 128>}, {pipeline_mode = #tpu.pipeline_mode<synchronous>, transform_indices = @transform_10, window_bounds = array<i64: 1, 128>}, {pipeline_mode = #tpu.pipeline_mode<synchronous>, transform_indices = @transform_11, window_bounds = array<i64: 1, 128>}, {pipeline_mode = #tpu.pipeline_mode<synchronous>, transform_indices = @transform_12, window_bounds = array<i64: 1, 384>}, {pipeline_mode = #tpu.pipeline_mode<synchronous>, transform_indices = @transform_13, window_bounds = array<i64: 1, 384>}, {transform_indices = @transform_14, window_bounds = array<i64: 2, 8, 128>}]} {
    %c0 = arith.constant 0 : index
    %c0_0 = arith.constant 0 : index
    %c0_1 = arith.constant 0 : index
    %0 = vector.load %arg1[%c0, %c0_0, %c0_1] : memref<2x8x8xf32, #tpu.memory_space<vmem>>, vector<2x8x8xf32>
    %c0_2 = arith.constant 0 : index
    %c0_3 = arith.constant 0 : index
    %c0_4 = arith.constant 0 : index
    %1 = vector.load %arg2[%c0_2, %c0_3, %c0_4] : memref<2x8x8xf32, #tpu.memory_space<vmem>>, vector<2x8x8xf32>
    %c0_5 = arith.constant 0 : index
    %c0_6 = arith.constant 0 : index
    %2 = vector.load %arg4[%c0_5, %c0_6] : memref<128x128xf32, #tpu.memory_space<vmem>>, vector<128x128xf32>
    %c0_7 = arith.constant 0 : index
    %c0_8 = arith.constant 0 : index
    %3 = vector.load %arg5[%c0_7, %c0_8] : memref<128x128xf32, #tpu.memory_space<vmem>>, vector<128x128xf32>
    %c0_9 = arith.constant 0 : index
    %c0_10 = arith.constant 0 : index
    %4 = vector.load %arg6[%c0_9, %c0_10] : memref<128x384xf32, #tpu.memory_space<vmem>>, vector<128x384xf32>
    %c0_11 = arith.constant 0 : index
    %c0_12 = arith.constant 0 : index
    %5 = vector.load %arg7[%c0_11, %c0_12] : memref<128x384xf32, #tpu.memory_space<vmem>>, vector<128x384xf32>
    %c0_13 = arith.constant 0 : index
    %c0_14 = arith.constant 0 : index
    %6 = vector.load %arg8[%c0_13, %c0_14] : memref<128x384xf32, #tpu.memory_space<vmem>>, vector<128x384xf32>
    %c0_15 = arith.constant 0 : index
    %c0_16 = arith.constant 0 : index
    %7 = vector.load %arg9[%c0_15, %c0_16] : memref<1x128xf32, #tpu.memory_space<vmem>>, vector<1x128xf32>
    %c0_17 = arith.constant 0 : index
    %c0_18 = arith.constant 0 : index
    %8 = vector.load %arg10[%c0_17, %c0_18] : memref<1x128xf32, #tpu.memory_space<vmem>>, vector<1x128xf32>
    %c0_19 = arith.constant 0 : index
    %c0_20 = arith.constant 0 : index
    %9 = vector.load %arg11[%c0_19, %c0_20] : memref<1x128xf32, #tpu.memory_space<vmem>>, vector<1x128xf32>
    %c0_21 = arith.constant 0 : index
    %c0_22 = arith.constant 0 : index
    %10 = vector.load %arg12[%c0_21, %c0_22] : memref<1x128xf32, #tpu.memory_space<vmem>>, vector<1x128xf32>
    %c0_23 = arith.constant 0 : index
    %c0_24 = arith.constant 0 : index
    %11 = vector.load %arg13[%c0_23, %c0_24] : memref<1x384xf32, #tpu.memory_space<vmem>>, vector<1x384xf32>
    %c0_25 = arith.constant 0 : index
    %c0_26 = arith.constant 0 : index
    %12 = vector.load %arg14[%c0_25, %c0_26] : memref<1x384xf32, #tpu.memory_space<vmem>>, vector<1x384xf32>
    %c0_27 = arith.constant 0 : index
    %c0_28 = arith.constant 0 : index
    %c0_29 = arith.constant 0 : index
    %13 = vector.load %arg3[%c0_27, %c0_28, %c0_29] : memref<2x8x128xf32, #tpu.memory_space<vmem>>, vector<2x8x128xf32>
    %14 = vector.shape_cast %13 : vector<2x8x128xf32> to vector<16x128xf32>
    %cst = arith.constant dense<0.000000e+00> : vector<16x128xf32>
    %15 = tpu.matmul %14, %2, %cst {dimension_numbers = #tpu.dot_dimension_numbers<[1], [0], [0], [1], [0, 0, 1, 1], [], []>} : vector<16x128xf32>, vector<128x128xf32>, vector<16x128xf32> -> vector<16x128xf32>
    %16 = vector.broadcast %7 : vector<1x128xf32> to vector<16x128xf32>
    %17 = arith.addf %15, %16 : vector<16x128xf32>
    %cst_30 = arith.constant dense<0.000000e+00> : vector<16x128xf32>
    %18 = tpu.matmul %14, %3, %cst_30 {dimension_numbers = #tpu.dot_dimension_numbers<[1], [0], [0], [1], [0, 0, 1, 1], [], []>} : vector<16x128xf32>, vector<128x128xf32>, vector<16x128xf32> -> vector<16x128xf32>
    %19 = vector.broadcast %8 : vector<1x128xf32> to vector<16x128xf32>
    %20 = arith.addf %18, %19 : vector<16x128xf32>
    %21 = vector.shape_cast %17 : vector<16x128xf32> to vector<2x8x128xf32>
    "tpu.trace_start"() <{level = 10 : i32, message = "bij,bjh->bih"}> : () -> ()
    %cst_31 = arith.constant dense<0.000000e+00> : vector<2x8x128xf32>
    %22 = tpu.matmul %0, %21, %cst_31 {dimension_numbers = #tpu.dot_dimension_numbers<[2], [1], [1], [2], [0, 0, 0, 1, 1, 2], [0], [0]>} : vector<2x8x8xf32>, vector<2x8x128xf32>, vector<2x8x128xf32> -> vector<2x8x128xf32>
    "tpu.trace_stop"() : () -> ()
    %23 = vector.shape_cast %22 : vector<2x8x128xf32> to vector<16x128xf32>
    %24 = vector.broadcast %9 : vector<1x128xf32> to vector<16x128xf32>
    %25 = arith.addf %23, %24 : vector<16x128xf32>
    %26 = vector.shape_cast %20 : vector<16x128xf32> to vector<2x8x128xf32>
    "tpu.trace_start"() <{level = 10 : i32, message = "bij,bjh->bih"}> : () -> ()
    %cst_32 = arith.constant dense<0.000000e+00> : vector<2x8x128xf32>
    %27 = tpu.matmul %1, %26, %cst_32 {dimension_numbers = #tpu.dot_dimension_numbers<[2], [1], [1], [2], [0, 0, 0, 1, 1, 2], [0], [0]>} : vector<2x8x8xf32>, vector<2x8x128xf32>, vector<2x8x128xf32> -> vector<2x8x128xf32>
    "tpu.trace_stop"() : () -> ()
    %28 = vector.shape_cast %27 : vector<2x8x128xf32> to vector<16x128xf32>
    %29 = vector.broadcast %10 : vector<1x128xf32> to vector<16x128xf32>
    %30 = arith.addf %28, %29 : vector<16x128xf32>
    %cst_33 = arith.constant dense<0.000000e+00> : vector<16x384xf32>
    %31 = tpu.matmul %25, %4, %cst_33 {dimension_numbers = #tpu.dot_dimension_numbers<[1], [0], [0], [1], [0, 0, 1, 1], [], []>} : vector<16x128xf32>, vector<128x384xf32>, vector<16x384xf32> -> vector<16x384xf32>
    %cst_34 = arith.constant dense<0.000000e+00> : vector<16x384xf32>
    %32 = tpu.matmul %30, %5, %cst_34 {dimension_numbers = #tpu.dot_dimension_numbers<[1], [0], [0], [1], [0, 0, 1, 1], [], []>} : vector<16x128xf32>, vector<128x384xf32>, vector<16x384xf32> -> vector<16x384xf32>
    %33 = arith.addf %31, %32 : vector<16x384xf32>
    %34 = vector.broadcast %11 : vector<1x384xf32> to vector<16x384xf32>
    %35 = arith.addf %33, %34 : vector<16x384xf32>
    %cst_35 = arith.constant dense<0.000000e+00> : vector<16x384xf32>
    %36 = tpu.matmul %14, %6, %cst_35 {dimension_numbers = #tpu.dot_dimension_numbers<[1], [0], [0], [1], [0, 0, 1, 1], [], []>} : vector<16x128xf32>, vector<128x384xf32>, vector<16x384xf32> -> vector<16x384xf32>
    %37 = vector.broadcast %12 : vector<1x384xf32> to vector<16x384xf32>
    %38 = arith.addf %36, %37 : vector<16x384xf32>
    %39 = vector.extract_strided_slice %35 {offsets = [0, 0], sizes = [16, 128], strides = [1, 1]} : vector<16x384xf32> to vector<16x128xf32>
    %40 = vector.extract_strided_slice %35 {offsets = [0, 128], sizes = [16, 128], strides = [1, 1]} : vector<16x384xf32> to vector<16x128xf32>
    %41 = vector.extract_strided_slice %35 {offsets = [0, 256], sizes = [16, 128], strides = [1, 1]} : vector<16x384xf32> to vector<16x128xf32>
    %42 = vector.extract_strided_slice %38 {offsets = [0, 0], sizes = [16, 128], strides = [1, 1]} : vector<16x384xf32> to vector<16x128xf32>
    %43 = vector.extract_strided_slice %38 {offsets = [0, 128], sizes = [16, 128], strides = [1, 1]} : vector<16x384xf32> to vector<16x128xf32>
    %44 = vector.extract_strided_slice %38 {offsets = [0, 256], sizes = [16, 128], strides = [1, 1]} : vector<16x384xf32> to vector<16x128xf32>
    %45 = arith.addf %39, %42 : vector<16x128xf32>
    %46 = arith.negf %45 : vector<16x128xf32>
    %47 = math.exp %46 : vector<16x128xf32>
    %cst_36 = arith.constant 1.000000e+00 : f32
    %48 = vector.broadcast %cst_36 : f32 to vector<16x128xf32>
    %49 = arith.addf %48, %47 : vector<16x128xf32>
    %50 = arith.divf %48, %49 : vector<16x128xf32>
    %51 = arith.addf %40, %43 : vector<16x128xf32>
    %52 = arith.negf %51 : vector<16x128xf32>
    %53 = math.exp %52 : vector<16x128xf32>
    %cst_37 = arith.constant 1.000000e+00 : f32
    %54 = vector.broadcast %cst_37 : f32 to vector<16x128xf32>
    %55 = arith.addf %54, %53 : vector<16x128xf32>
    %56 = arith.divf %54, %55 : vector<16x128xf32>
    %57 = arith.mulf %50, %44 : vector<16x128xf32>
    %58 = arith.addf %41, %57 : vector<16x128xf32>
    %59 = math.tanh %58 : vector<16x128xf32>
    %60 = arith.subf %14, %59 : vector<16x128xf32>
    %61 = arith.mulf %56, %60 : vector<16x128xf32>
    %62 = arith.addf %59, %61 : vector<16x128xf32>
    %63 = vector.shape_cast %62 : vector<16x128xf32> to vector<2x8x128xf32>
    %c0_38 = arith.constant 0 : index
    %c0_39 = arith.constant 0 : index
    %c0_40 = arith.constant 0 : index
    %64 = vector.load %arg15[%c0_38, %c0_39, %c0_40] : memref<2x8x128xf32, #tpu.memory_space<vmem>>, vector<2x8x128xf32>
    tpu.vector_store %arg15[%c0_38, %c0_39, %c0_40], %63 {strides = array<i32>} : memref<2x8x128xf32, #tpu.memory_space<vmem>>, vector<2x8x128xf32>,
    return
  }
  func.func @transform_0(%arg0: i32) -> (i32, i32, i32) {
    %c0_i32 = arith.constant 0 : i32
    %c0_i32_0 = arith.constant 0 : i32
    %c0_i32_1 = arith.constant 0 : i32
    return %arg0, %c0_i32, %c0_i32_0 : i32, i32, i32
  }
  func.func @transform_1(%arg0: i32) -> (i32, i32, i32) {
    %c0_i32 = arith.constant 0 : i32
    %c0_i32_0 = arith.constant 0 : i32
    %c0_i32_1 = arith.constant 0 : i32
    return %arg0, %c0_i32, %c0_i32_0 : i32, i32, i32
  }
  func.func @transform_2(%arg0: i32) -> (i32, i32, i32) {
    %c0_i32 = arith.constant 0 : i32
    %c0_i32_0 = arith.constant 0 : i32
    %c0_i32_1 = arith.constant 0 : i32
    return %arg0, %c0_i32, %c0_i32_0 : i32, i32, i32
  }
  func.func @transform_3(%arg0: i32) -> (i32, i32) {
    %c0_i32 = arith.constant 0 : i32
    %c0_i32_0 = arith.constant 0 : i32
    %c0_i32_1 = arith.constant 0 : i32
    return %c0_i32, %c0_i32_0 : i32, i32
  }
  func.func @transform_4(%arg0: i32) -> (i32, i32) {
    %c0_i32 = arith.constant 0 : i32
    %c0_i32_0 = arith.constant 0 : i32
    %c0_i32_1 = arith.constant 0 : i32
    return %c0_i32, %c0_i32_0 : i32, i32
  }
  func.func @transform_5(%arg0: i32) -> (i32, i32) {
    %c0_i32 = arith.constant 0 : i32
    %c0_i32_0 = arith.constant 0 : i32
    %c0_i32_1 = arith.constant 0 : i32
    return %c0_i32, %c0_i32_0 : i32, i32
  }
  func.func @transform_6(%arg0: i32) -> (i32, i32) {
    %c0_i32 = arith.constant 0 : i32
    %c0_i32_0 = arith.constant 0 : i32
    %c0_i32_1 = arith.constant 0 : i32
    return %c0_i32, %c0_i32_0 : i32, i32
  }
  func.func @transform_7(%arg0: i32) -> (i32, i32) {
    %c0_i32 = arith.constant 0 : i32
    %c0_i32_0 = arith.constant 0 : i32
    %c0_i32_1 = arith.constant 0 : i32
    return %c0_i32, %c0_i32_0 : i32, i32
  }
  func.func @transform_8(%arg0: i32) -> (i32, i32) {
    %c0_i32 = arith.constant 0 : i32
    %c0_i32_0 = arith.constant 0 : i32
    %c0_i32_1 = arith.constant 0 : i32
    return %c0_i32, %c0_i32_0 : i32, i32
  }
  func.func @transform_9(%arg0: i32) -> (i32, i32) {
    %c0_i32 = arith.constant 0 : i32
    %c0_i32_0 = arith.constant 0 : i32
    %c0_i32_1 = arith.constant 0 : i32
    return %c0_i32, %c0_i32_0 : i32, i32
  }
  func.func @transform_10(%arg0: i32) -> (i32, i32) {
    %c0_i32 = arith.constant 0 : i32
    %c0_i32_0 = arith.constant 0 : i32
    %c0_i32_1 = arith.constant 0 : i32
    return %c0_i32, %c0_i32_0 : i32, i32
  }
  func.func @transform_11(%arg0: i32) -> (i32, i32) {
    %c0_i32 = arith.constant 0 : i32
    %c0_i32_0 = arith.constant 0 : i32
    %c0_i32_1 = arith.constant 0 : i32
    return %c0_i32, %c0_i32_0 : i32, i32
  }
  func.func @transform_12(%arg0: i32) -> (i32, i32) {
    %c0_i32 = arith.constant 0 : i32
    %c0_i32_0 = arith.constant 0 : i32
    %c0_i32_1 = arith.constant 0 : i32
    return %c0_i32, %c0_i32_0 : i32, i32
  }
  func.func @transform_13(%arg0: i32) -> (i32, i32) {
    %c0_i32 = arith.constant 0 : i32
    %c0_i32_0 = arith.constant 0 : i32
    %c0_i32_1 = arith.constant 0 : i32
    return %c0_i32, %c0_i32_0 : i32, i32
  }
  func.func @transform_14(%arg0: i32) -> (i32, i32, i32) {
    %c0_i32 = arith.constant 0 : i32
    %c0_i32_0 = arith.constant 0 : i32
    %c0_i32_1 = arith.constant 0 : i32
    return %arg0, %c0_i32, %c0_i32_0 : i32, i32, i32
  }
}

</mosaic_0001>

<llo_original>
// kernel: tpu_custom_call.1
$region0: #{tpu_custom_call.1}
  #allocation0 [shape = 'u32[]', space=smem, size = 0x4, offset = 0x4, fixed_abs, tag = 'smem constant byte address 0x4 - core index']
  #allocation1 [shape = 'u32[72,128]{1,0:T(1,128)}', space=vmem, size = 0x9000, scoped, tag = 'internal scratch']
  %s0 = inlined_call_operand.hbm [shape: f32[2,8,8], index: 0, kind: input, shape index: {}]
  %s1 = inlined_call_operand.hbm [shape: f32[2,8,8], index: 1, kind: input, shape index: {}]
  %s2 = inlined_call_operand.hbm [shape: f32[2,8,128], index: 2, kind: input, shape index: {}]
  %s3 = inlined_call_operand.hbm [shape: f32[128,128], index: 3, kind: input, shape index: {}]
  %s4 = inlined_call_operand.hbm [shape: f32[128,128], index: 4, kind: input, shape index: {}]
  %s5 = inlined_call_operand.hbm [shape: f32[128,384], index: 5, kind: input, shape index: {}]
  %s6 = inlined_call_operand.hbm [shape: f32[128,384], index: 6, kind: input, shape index: {}]
  %s7 = inlined_call_operand.hbm [shape: f32[128,384], index: 7, kind: input, shape index: {}]
  %s8 = inlined_call_operand.vmem [shape: f32[1,128], index: 8, kind: input, shape index: {}]
  %s9 = inlined_call_operand.vmem [shape: f32[1,128], index: 9, kind: input, shape index: {}]
  %s10 = inlined_call_operand.vmem [shape: f32[1,128], index: 10, kind: input, shape index: {}]
  %s11 = inlined_call_operand.vmem [shape: f32[1,128], index: 11, kind: input, shape index: {}]
  %s12 = inlined_call_operand.vmem [shape: f32[1,384], index: 12, kind: input, shape index: {}]
  %s13 = inlined_call_operand.vmem [shape: f32[1,384], index: 13, kind: input, shape index: {}]
  %s14 = inlined_call_operand.hbm [shape: f32[2,8,128], index: 14, kind: output, shape index: {}]
  %s15 = sld [smem:[#allocation0]]
  $region98: #{tpu_custom_call.1} parent=0
    _
  %s17 = ssub.s32 1, %s15
  %s18 = scalar_select 0, %s17, %s15
  $region1: #{tpu_custom_call.1} parent=0
    #allocation2 [shape = 'u8[8192]{0}', space=vmem, size = 0x2000, scoped, tag = 'input window, operand 0, single buffered']
    #allocation3 [shape = 's32[1]{0}', space=sflag, size = 0x4, scoped, tag = 'scoped memory for tpu_custom_call.1']
    #allocation4 [shape = 's32[1]{0}', space=sflag, size = 0x4, scoped, tag = 'scoped memory for tpu_custom_call.1']
    #allocation5 [shape = 'u8[8192]{0}', space=vmem, size = 0x2000, scoped, tag = 'input window, operand 1, single buffered']
    #allocation6 [shape = 's32[1]{0}', space=sflag, size = 0x4, scoped, tag = 'scoped memory for tpu_custom_call.1']
    #allocation7 [shape = 'u8[8192]{0}', space=vmem, size = 0x2000, scoped, tag = 'input window, operand 2, single buffered']
    #allocation8 [shape = 'u8[65536]{0}', space=vmem, size = 0x10000, scoped, tag = 'input window, operand 3, single buffered']
    #allocation9 [shape = 's32[1]{0}', space=sflag, size = 0x4, scoped, tag = 'scoped memory for tpu_custom_call.1']
    #allocation10 [shape = 'u8[65536]{0}', space=vmem, size = 0x10000, scoped, tag = 'input window, operand 4, single buffered']
    #allocation11 [shape = 'u8[196608]{0}', space=vmem, size = 0x30000, scoped, tag = 'input window, operand 5, single buffered']
    #allocation12 [shape = 's32[1]{0}', space=sflag, size = 0x4, scoped, tag = 'scoped memory for tpu_custom_call.1']
    #allocation13 [shape = 'u8[196608]{0}', space=vmem, size = 0x30000, scoped, tag = 'input window, operand 6, single buffered']
    #allocation14 [shape = 'u8[196608]{0}', space=vmem, size = 0x30000, scoped, tag = 'input window, operand 7, single buffered']
    #allocation15 [shape = 's32[1]{0}', space=sflag, size = 0x4, scoped, tag = 'scoped memory for tpu_custom_call.1']
    #allocation16 [shape = 'u8[8192]{0}', space=vmem, size = 0x2000, scoped, tag = 'output window, operand 0, single buffered']
    %19 = vsyncpa [#allocation3], 0
    %20 = vsyncpa [#allocation6], 0
    %21 = vsyncpa [#allocation9], 0
    %22 = vsyncpa [#allocation12], 0
    %23 = vsyncpa [#allocation15], 0
    %24 = vsyncpa [#allocation4], 0
    // Predicated region
    $region2: #{tpu_custom_call.1} parent=1 // pred_check
      _
    $region3: #{tpu_custom_call.1} parent=1 // pred_check_branch
      %26 = sbr.rel (0) target = $region5
    $region4: #{tpu_custom_call.1} parent=1 // pred_region
      %28 = vsyncadd [#allocation3], 0
      %s29 = sshll.u32 %s0, 4
      %s30 = int_to_ptr.hbm [resolvable:$true] %s29
      %s31 = sshll.u32 [#allocation2], 4
      %s32 = int_to_ptr.vmem [resolvable:$true] %s31
      %37 = dma.hbm_to_vmem [thread:$0]  %s30, 256, %s32, [#allocation3], 128, 128, 8
    $region5: #{tpu_custom_call.1} parent=1 // pred_fallthru
      _
    // Predicated region
    $region6: #{tpu_custom_call.1} parent=1 // pred_check
      _
    $region7: #{tpu_custom_call.1} parent=1 // pred_check_branch
      %39 = sbr.rel (0) target = $region9
    $region8: #{tpu_custom_call.1} parent=1 // pred_region
      %41 = vsyncadd [#allocation6], 0
      %s42 = sshll.u32 %s1, 4
      %s43 = int_to_ptr.hbm [resolvable:$true] %s42
      %s44 = sshll.u32 [#allocation5], 4
      %s45 = int_to_ptr.vmem [resolvable:$true] %s44
      %50 = dma.hbm_to_vmem [thread:$0]  %s43, 256, %s45, [#allocation6], 128, 128, 8
    $region9: #{tpu_custom_call.1} parent=1 // pred_fallthru
      _
    // Predicated region
    $region10: #{tpu_custom_call.1} parent=1 // pred_check
      _
    $region11: #{tpu_custom_call.1} parent=1 // pred_check_branch
      %52 = sbr.rel (0) target = $region13
    $region12: #{tpu_custom_call.1} parent=1 // pred_region
      %54 = vsyncadd [#allocation6], 0
      %s55 = sshll.u32 %s2, 4
      %s56 = int_to_ptr.hbm [resolvable:$true] %s55
      %s57 = sshll.u32 [#allocation7], 4
      %s58 = int_to_ptr.vmem [resolvable:$true] %s57
      %63 = dma.hbm_to_vmem [thread:$0]  %s56, 256, %s58, [#allocation6], 128, 128, 8
    $region13: #{tpu_custom_call.1} parent=1 // pred_fallthru
      _
    // Predicated region
    $region14: #{tpu_custom_call.1} parent=1 // pred_check
      _
    $region15: #{tpu_custom_call.1} parent=1 // pred_check_branch
      %65 = sbr.rel (0) target = $region17
    $region16: #{tpu_custom_call.1} parent=1 // pred_region
      %67 = vsyncadd [#allocation9], 0
      %s68 = sshll.u32 %s3, 4
      %s69 = int_to_ptr.hbm [resolvable:$true] %s68
      %s70 = sshll.u32 [#allocation8], 4
      %s71 = int_to_ptr.vmem [resolvable:$true] %s70
      %76 = dma.hbm_to_vmem [thread:$0]  %s69, 2048, %s71, [#allocation9], 128, 128, 8
    $region17: #{tpu_custom_call.1} parent=1 // pred_fallthru
      _
    // Predicated region
    $region18: #{tpu_custom_call.1} parent=1 // pred_check
      _
    $region19: #{tpu_custom_call.1} parent=1 // pred_check_branch
      %78 = sbr.rel (0) target = $region21
    $region20: #{tpu_custom_call.1} parent=1 // pred_region
      %80 = vsyncadd [#allocation9], 0
      %s81 = sshll.u32 %s4, 4
      %s82 = int_to_ptr.hbm [resolvable:$true] %s81
      %s83 = sshll.u32 [#allocation10], 4
      %s84 = int_to_ptr.vmem [resolvable:$true] %s83
      %89 = dma.hbm_to_vmem [thread:$0]  %s82, 2048, %s84, [#allocation9], 128, 128, 8
    $region21: #{tpu_custom_call.1} parent=1 // pred_fallthru
      _
    // Predicated region
    $region22: #{tpu_custom_call.1} parent=1 // pred_check
      _
    $region23: #{tpu_custom_call.1} parent=1 // pred_check_branch
      %91 = sbr.rel (0) target = $region25
    $region24: #{tpu_custom_call.1} parent=1 // pred_region
      %93 = vsyncadd [#allocation12], 0
      %s94 = sshll.u32 %s5, 4
      %s95 = int_to_ptr.hbm [resolvable:$true] %s94
      %s96 = sshll.u32 [#allocation11], 4
      %s97 = int_to_ptr.vmem [resolvable:$true] %s96
      %102 = dma.hbm_to_vmem [thread:$0]  %s95, 6144, %s97, [#allocation12], 384, 384, 24
    $region25: #{tpu_custom_call.1} parent=1 // pred_fallthru
      _
    // Predicated region
    $region26: #{tpu_custom_call.1} parent=1 // pred_check
      _
    $region27: #{tpu_custom_call.1} parent=1 // pred_check_branch
      %104 = sbr.rel (0) target = $region29
    $region28: #{tpu_custom_call.1} parent=1 // pred_region
      %106 = vsyncadd [#allocation12], 0
      %s107 = sshll.u32 %s6, 4
      %s108 = int_to_ptr.hbm [resolvable:$true] %s107
      %s109 = sshll.u32 [#allocation13], 4
      %s110 = int_to_ptr.vmem [resolvable:$true] %s109
      %115 = dma.hbm_to_vmem [thread:$0]  %s108, 6144, %s110, [#allocation12], 384, 384, 24
    $region29: #{tpu_custom_call.1} parent=1 // pred_fallthru
      _
    // Predicated region
    $region30: #{tpu_custom_call.1} parent=1 // pred_check
      _
    $region31: #{tpu_custom_call.1} parent=1 // pred_check_branch
      %117 = sbr.rel (0) target = $region33
    $region32: #{tpu_custom_call.1} parent=1 // pred_region
      %119 = vsyncadd [#allocation15], 0
      %s120 = sshll.u32 %s7, 4
      %s121 = int_to_ptr.hbm [resolvable:$true] %s120
      %s122 = sshll.u32 [#allocation14], 4
      %s123 = int_to_ptr.vmem [resolvable:$true] %s122
      %128 = dma.hbm_to_vmem [thread:$0]  %s121, 6144, %s123, [#allocation15], 384, 384, 24
    $region33: #{tpu_custom_call.1} parent=1 // pred_fallthru
      _
    // Predicated region
    $region34: #{tpu_custom_call.1} parent=1 // pred_check
      _
    $region35: #{tpu_custom_call.1} parent=1 // pred_check_branch
      %130 = sbr.rel (0) target = $region37
    $region36: #{tpu_custom_call.1} parent=1 // pred_region
      _
    $region37: #{tpu_custom_call.1} parent=1 // pred_fallthru
      _
    // Predicated region
    $region38: #{tpu_custom_call.1} parent=1 // pred_check
      _
    $region39: #{tpu_custom_call.1} parent=1 // pred_check_branch
      %132 = sbr.rel (0) target = $region41
    $region40: #{tpu_custom_call.1} parent=1 // pred_region
      _
    $region41: #{tpu_custom_call.1} parent=1 // pred_fallthru
      _
    // Predicated region
    $region42: #{tpu_custom_call.1} parent=1 // pred_check
      _
    $region43: #{tpu_custom_call.1} parent=1 // pred_check_branch
      %134 = sbr.rel (0) target = $region45
    $region44: #{tpu_custom_call.1} parent=1 // pred_region
      _
    $region45: #{tpu_custom_call.1} parent=1 // pred_fallthru
      _
    // Predicated region
    $region46: #{tpu_custom_call.1} parent=1 // pred_check
      _
    $region47: #{tpu_custom_call.1} parent=1 // pred_check_branch
      %136 = sbr.rel (0) target = $region49
    $region48: #{tpu_custom_call.1} parent=1 // pred_region
      _
    $region49: #{tpu_custom_call.1} parent=1 // pred_fallthru
      _
    // Predicated region
    $region50: #{tpu_custom_call.1} parent=1 // pred_check
      _
    $region51: #{tpu_custom_call.1} parent=1 // pred_check_branch
      %138 = sbr.rel (0) target = $region53
    $region52: #{tpu_custom_call.1} parent=1 // pred_region
      _
    $region53: #{tpu_custom_call.1} parent=1 // pred_fallthru
      _
    // Predicated region
    $region54: #{tpu_custom_call.1} parent=1 // pred_check
      _
    $region55: #{tpu_custom_call.1} parent=1 // pred_check_branch
      %140 = sbr.rel (0) target = $region57
    $region56: #{tpu_custom_call.1} parent=1 // pred_region
      _
    $region57: #{tpu_custom_call.1} parent=1 // pred_fallthru
      _
    // Predicated region
    $region58: #{tpu_custom_call.1} parent=1 // pred_check
      _
    $region59: #{tpu_custom_call.1} parent=1 // pred_check_branch
      %142 = sbr.rel (0) target = $region61
    $region60: #{tpu_custom_call.1} parent=1 // pred_region
      %144 = dma.done [#allocation3], 256
    $region61: #{tpu_custom_call.1} parent=1 // pred_fallthru
      _
    // Predicated region
    $region62: #{tpu_custom_call.1} parent=1 // pred_check
      _
    $region63: #{tpu_custom_call.1} parent=1 // pred_check_branch
      %146 = sbr.rel (0) target = $region65
    $region64: #{tpu_custom_call.1} parent=1 // pred_region
      %148 = dma.done [#allocation6], 256
    $region65: #{tpu_custom_call.1} parent=1 // pred_fallthru
      _
    // Predicated region
    $region66: #{tpu_custom_call.1} parent=1 // pred_check
      _
    $region67: #{tpu_custom_call.1} parent=1 // pred_check_branch
      %150 = sbr.rel (0) target = $region69
    $region68: #{tpu_custom_call.1} parent=1 // pred_region
      %152 = dma.done [#allocation6], 256
    $region69: #{tpu_custom_call.1} parent=1 // pred_fallthru
      _
    // Predicated region
    $region70: #{tpu_custom_call.1} parent=1 // pred_check
      _
    $region71: #{tpu_custom_call.1} parent=1 // pred_check_branch
      %154 = sbr.rel (0) target = $region73
    $region72: #{tpu_custom_call.1} parent=1 // pred_region
      %156 = dma.done [#allocation9], 2048
    $region73: #{tpu_custom_call.1} parent=1 // pred_fallthru
      _
    // Predicated region
    $region74: #{tpu_custom_call.1} parent=1 // pred_check
      _
    $region75: #{tpu_custom_call.1} parent=1 // pred_check_branch
      %158 = sbr.rel (0) target = $region77
    $region76: #{tpu_custom_call.1} parent=1 // pred_region
      %160 = dma.done [#allocation9], 2048
    $region77: #{tpu_custom_call.1} parent=1 // pred_fallthru
      _
    // Predicated region
    $region78: #{tpu_custom_call.1} parent=1 // pred_check
      _
    $region79: #{tpu_custom_call.1} parent=1 // pred_check_branch
      %162 = sbr.rel (0) target = $region81
    $region80: #{tpu_custom_call.1} parent=1 // pred_region
      %164 = dma.done [#allocation12], 6144
    $region81: #{tpu_custom_call.1} parent=1 // pred_fallthru
      _
    // Predicated region
    $region82: #{tpu_custom_call.1} parent=1 // pred_check
      _
    $region83: #{tpu_custom_call.1} parent=1 // pred_check_branch
      %166 = sbr.rel (0) target = $region85
    $region84: #{tpu_custom_call.1} parent=1 // pred_region
      %168 = dma.done [#allocation12], 6144
    $region85: #{tpu_custom_call.1} parent=1 // pred_fallthru
      _
    // Predicated region
    $region86: #{tpu_custom_call.1} parent=1 // pred_check
      _
    $region87: #{tpu_custom_call.1} parent=1 // pred_check_branch
      %170 = sbr.rel (0) target = $region89
    $region88: #{tpu_custom_call.1} parent=1 // pred_region
      %172 = dma.done [#allocation15], 6144
    $region89: #{tpu_custom_call.1} parent=1 // pred_fallthru
      _
    %v173 = vld [vmem:[#allocation2] sm:$0xff]
    %v174 = vld [vmem:[#allocation2 + $0x8] sm:$0xff]
    %v175 = vld [vmem:[#allocation5] sm:$0xff]
    %v176 = vld [vmem:[#allocation5 + $0x8] sm:$0xff]
    %v177 = vld [vmem:[#allocation8] sm:$0xff]
    %v178 = vld [vmem:[#allocation8 + $0x8] sm:$0xff]
    %v179 = vld [vmem:[#allocation8 + $0x10] sm:$0xff]
    %v180 = vld [vmem:[#allocation8 + $0x18] sm:$0xff]
    %v181 = vld [vmem:[#allocation8 + $0x20] sm:$0xff]
    %v182 = vld [vmem:[#allocation8 + $0x28] sm:$0xff]
    %v183 = vld [vmem:[#allocation8 + $0x30] sm:$0xff]
    %v184 = vld [vmem:[#allocation8 + $0x38] sm:$0xff]
    %v185 = vld [vmem:[#allocation8 + $0x40] sm:$0xff]
    %v186 = vld [vmem:[#allocation8 + $0x48] sm:$0xff]
    %v187 = vld [vmem:[#allocation8 + $0x50] sm:$0xff]
    %v188 = vld [vmem:[#allocation8 + $0x58] sm:$0xff]
    %v189 = vld [vmem:[#allocation8 + $0x60] sm:$0xff]
    %v190 = vld [vmem:[#allocation8 + $0x68] sm:$0xff]
    %v191 = vld [vmem:[#allocation8 + $0x70] sm:$0xff]
    %v192 = vld [vmem:[#allocation8 + $0x78] sm:$0xff]
    %v193 = vld [vmem:[#allocation10] sm:$0xff]
    %v194 = vld [vmem:[#allocation10 + $0x8] sm:$0xff]
    %v195 = vld [vmem:[#allocation10 + $0x10] sm:$0xff]
    %v196 = vld [vmem:[#allocation10 + $0x18] sm:$0xff]
    %v197 = vld [vmem:[#allocation10 + $0x20] sm:$0xff]
    %v198 = vld [vmem:[#allocation10 + $0x28] sm:$0xff]
    %v199 = vld [vmem:[#allocation10 + $0x30] sm:$0xff]
    %v200 = vld [vmem:[#allocation10 + $0x38] sm:$0xff]
    %v201 = vld [vmem:[#allocation10 + $0x40] sm:$0xff]
    %v202 = vld [vmem:[#allocation10 + $0x48] sm:$0xff]
    %v203 = vld [vmem:[#allocation10 + $0x50] sm:$0xff]
    %v204 = vld [vmem:[#allocation10 + $0x58] sm:$0xff]
    %v205 = vld [vmem:[#allocation10 + $0x60] sm:$0xff]
    %v206 = vld [vmem:[#allocation10 + $0x68] sm:$0xff]
    %v207 = vld [vmem:[#allocation10 + $0x70] sm:$0xff]
    %v208 = vld [vmem:[#allocation10 + $0x78] sm:$0xff]
    %v209 = vld [vmem:[#allocation11] sm:$0xff]
    %v210 = vld [vmem:[#allocation11 + $0x8] sm:$0xff]
    %v211 = vld [vmem:[#allocation11 + $0x10] sm:$0xff]
    %v212 = vld [vmem:[#allocation11 + $0x18] sm:$0xff]
    %v213 = vld [vmem:[#allocation11 + $0x20] sm:$0xff]
    %v214 = vld [vmem:[#allocation11 + $0x28] sm:$0xff]
    %v215 = vld [vmem:[#allocation11 + $0x30] sm:$0xff]
    %v216 = vld [vmem:[#allocation11 + $0x38] sm:$0xff]
    %v217 = vld [vmem:[#allocation11 + $0x40] sm:$0xff]
    %v218 = vld [vmem:[#allocation11 + $0x48] sm:$0xff]
    %v219 = vld [vmem:[#allocation11 + $0x50] sm:$0xff]
    %v220 = vld [vmem:[#allocation11 + $0x58] sm:$0xff]
    %v221 = vld [vmem:[#allocation11 + $0x60] sm:$0xff]
    %v222 = vld [vmem:[#allocation11 + $0x68] sm:$0xff]
    %v223 = vld [vmem:[#allocation11 + $0x70] sm:$0xff]
    %v224 = vld [vmem:[#allocation11 + $0x78] sm:$0xff]
    %v225 = vld [vmem:[#allocation11 + $0x80] sm:$0xff]
    %v226 = vld [vmem:[#allocation11 + $0x88] sm:$0xff]
    %v227 = vld [vmem:[#allocation11 + $0x90] sm:$0xff]
    %v228 = vld [vmem:[#allocation11 + $0x98] sm:$0xff]
    %v229 = vld [vmem:[#allocation11 + $0xa0] sm:$0xff]
    %v230 = vld [vmem:[#allocation11 + $0xa8] sm:$0xff]
    %v231 = vld [vmem:[#allocation11 + $0xb0] sm:$0xff]
    %v232 = vld [vmem:[#allocation11 + $0xb8] sm:$0xff]
    %v233 = vld [vmem:[#allocation11 + $0xc0] sm:$0xff]
    %v234 = vld [vmem:[#allocation11 + $0xc8] sm:$0xff]
    %v235 = vld [vmem:[#allocation11 + $0xd0] sm:$0xff]
    %v236 = vld [vmem:[#allocation11 + $0xd8] sm:$0xff]
    %v237 = vld [vmem:[#allocation11 + $0xe0] sm:$0xff]
    %v238 = vld [vmem:[#allocation11 + $0xe8] sm:$0xff]
    %v239 = vld [vmem:[#allocation11 + $0xf0] sm:$0xff]
    %v240 = vld [vmem:[#allocation11 + $0xf8] sm:$0xff]
    %v241 = vld [vmem:[#allocation11 + $0x100] sm:$0xff]
    %v242 = vld [vmem:[#allocation11 + $0x108] sm:$0xff]
    %v243 = vld [vmem:[#allocation11 + $0x110] sm:$0xff]
    %v244 = vld [vmem:[#allocation11 + $0x118] sm:$0xff]
    %v245 = vld [vmem:[#allocation11 + $0x120] sm:$0xff]
    %v246 = vld [vmem:[#allocation11 + $0x128] sm:$0xff]
    %v247 = vld [vmem:[#allocation11 + $0x130] sm:$0xff]
    %v248 = vld [vmem:[#allocation11 + $0x138] sm:$0xff]
    %v249 = vld [vmem:[#allocation11 + $0x140] sm:$0xff]
    %v250 = vld [vmem:[#allocation11 + $0x148] sm:$0xff]
    %v251 = vld [vmem:[#allocation11 + $0x150] sm:$0xff]
    %v252 = vld [vmem:[#allocation11 + $0x158] sm:$0xff]
    %v253 = vld [vmem:[#allocation11 + $0x160] sm:$0xff]
    %v254 = vld [vmem:[#allocation11 + $0x168] sm:$0xff]
    %v255 = vld [vmem:[#allocation11 + $0x170] sm:$0xff]
    %v256 = vld [vmem:[#allocation11 + $0x178] sm:$0xff]
    %v257 = vld [vmem:[#allocation13] sm:$0xff]
    %v258 = vld [vmem:[#allocation13 + $0x8] sm:$0xff]
    %v259 = vld [vmem:[#allocation13 + $0x10] sm:$0xff]
    %v260 = vld [vmem:[#allocation13 + $0x18] sm:$0xff]
    %v261 = vld [vmem:[#allocation13 + $0x20] sm:$0xff]
    %v262 = vld [vmem:[#allocation13 + $0x28] sm:$0xff]
    %v263 = vld [vmem:[#allocation13 + $0x30] sm:$0xff]
    %v264 = vld [vmem:[#allocation13 + $0x38] sm:$0xff]
    %v265 = vld [vmem:[#allocation13 + $0x40] sm:$0xff]
    %v266 = vld [vmem:[#allocation13 + $0x48] sm:$0xff]
    %v267 = vld [vmem:[#allocation13 + $0x50] sm:$0xff]
    %v268 = vld [vmem:[#allocation13 + $0x58] sm:$0xff]
    %v269 = vld [vmem:[#allocation13 + $0x60] sm:$0xff]
    %v270 = vld [vmem:[#allocation13 + $0x68] sm:$0xff]
    %v271 = vld [vmem:[#allocation13 + $0x70] sm:$0xff]
    %v272 = vld [vmem:[#allocation13 + $0x78] sm:$0xff]
    %v273 = vld [vmem:[#allocation13 + $0x80] sm:$0xff]
    %v274 = vld [vmem:[#allocation13 + $0x88] sm:$0xff]
    %v275 = vld [vmem:[#allocation13 + $0x90] sm:$0xff]
    %v276 = vld [vmem:[#allocation13 + $0x98] sm:$0xff]
    %v277 = vld [vmem:[#allocation13 + $0xa0] sm:$0xff]
    %v278 = vld [vmem:[#allocation13 + $0xa8] sm:$0xff]
    %v279 = vld [vmem:[#allocation13 + $0xb0] sm:$0xff]
    %v280 = vld [vmem:[#allocation13 + $0xb8] sm:$0xff]
    %v281 = vld [vmem:[#allocation13 + $0xc0] sm:$0xff]
    %v282 = vld [vmem:[#allocation13 + $0xc8] sm:$0xff]
    %v283 = vld [vmem:[#allocation13 + $0xd0] sm:$0xff]
    %v284 = vld [vmem:[#allocation13 + $0xd8] sm:$0xff]
    %v285 = vld [vmem:[#allocation13 + $0xe0] sm:$0xff]
    %v286 = vld [vmem:[#allocation13 + $0xe8] sm:$0xff]
    %v287 = vld [vmem:[#allocation13 + $0xf0] sm:$0xff]
    %v288 = vld [vmem:[#allocation13 + $0xf8] sm:$0xff]
    %v289 = vld [vmem:[#allocation13 + $0x100] sm:$0xff]
    %v290 = vld [vmem:[#allocation13 + $0x108] sm:$0xff]
    %v291 = vld [vmem:[#allocation13 + $0x110] sm:$0xff]
    %v292 = vld [vmem:[#allocation13 + $0x118] sm:$0xff]
    %v293 = vld [vmem:[#allocation13 + $0x120] sm:$0xff]
    %v294 = vld [vmem:[#allocation13 + $0x128] sm:$0xff]
    %v295 = vld [vmem:[#allocation13 + $0x130] sm:$0xff]
    %v296 = vld [vmem:[#allocation13 + $0x138] sm:$0xff]
    %v297 = vld [vmem:[#allocation13 + $0x140] sm:$0xff]
    %v298 = vld [vmem:[#allocation13 + $0x148] sm:$0xff]
    %v299 = vld [vmem:[#allocation13 + $0x150] sm:$0xff]
    %v300 = vld [vmem:[#allocation13 + $0x158] sm:$0xff]
    %v301 = vld [vmem:[#allocation13 + $0x160] sm:$0xff]
    %v302 = vld [vmem:[#allocation13 + $0x168] sm:$0xff]
    %v303 = vld [vmem:[#allocation13 + $0x170] sm:$0xff]
    %v304 = vld [vmem:[#allocation13 + $0x178] sm:$0xff]
    %v305 = vld [vmem:[#allocation14] sm:$0xff]
    %v306 = vld [vmem:[#allocation14 + $0x8] sm:$0xff]
    %v307 = vld [vmem:[#allocation14 + $0x10] sm:$0xff]
    %v308 = vld [vmem:[#allocation14 + $0x18] sm:$0xff]
    %v309 = vld [vmem:[#allocation14 + $0x20] sm:$0xff]
    %v310 = vld [vmem:[#allocation14 + $0x28] sm:$0xff]
    %v311 = vld [vmem:[#allocation14 + $0x30] sm:$0xff]
    %v312 = vld [vmem:[#allocation14 + $0x38] sm:$0xff]
    %v313 = vld [vmem:[#allocation14 + $0x40] sm:$0xff]
    %v314 = vld [vmem:[#allocation14 + $0x48] sm:$0xff]
    %v315 = vld [vmem:[#allocation14 + $0x50] sm:$0xff]
    %v316 = vld [vmem:[#allocation14 + $0x58] sm:$0xff]
    %v317 = vld [vmem:[#allocation14 + $0x60] sm:$0xff]
    %v318 = vld [vmem:[#allocation14 + $0x68] sm:$0xff]
    %v319 = vld [vmem:[#allocation14 + $0x70] sm:$0xff]
    %v320 = vld [vmem:[#allocation14 + $0x78] sm:$0xff]
    %v321 = vld [vmem:[#allocation14 + $0x80] sm:$0xff]
    %v322 = vld [vmem:[#allocation14 + $0x88] sm:$0xff]
    %v323 = vld [vmem:[#allocation14 + $0x90] sm:$0xff]
    %v324 = vld [vmem:[#allocation14 + $0x98] sm:$0xff]
    %v325 = vld [vmem:[#allocation14 + $0xa0] sm:$0xff]
    %v326 = vld [vmem:[#allocation14 + $0xa8] sm:$0xff]
    %v327 = vld [vmem:[#allocation14 + $0xb0] sm:$0xff]
    %v328 = vld [vmem:[#allocation14 + $0xb8] sm:$0xff]
    %v329 = vld [vmem:[#allocation14 + $0xc0] sm:$0xff]
    %v330 = vld [vmem:[#allocation14 + $0xc8] sm:$0xff]
    %v331 = vld [vmem:[#allocation14 + $0xd0] sm:$0xff]
    %v332 = vld [vmem:[#allocation14 + $0xd8] sm:$0xff]
    %v333 = vld [vmem:[#allocation14 + $0xe0] sm:$0xff]
    %v334 = vld [vmem:[#allocation14 + $0xe8] sm:$0xff]
    %v335 = vld [vmem:[#allocation14 + $0xf0] sm:$0xff]
    %v336 = vld [vmem:[#allocation14 + $0xf8] sm:$0xff]
    %v337 = vld [vmem:[#allocation14 + $0x100] sm:$0xff]
    %v338 = vld [vmem:[#allocation14 + $0x108] sm:$0xff]
    %v339 = vld [vmem:[#allocation14 + $0x110] sm:$0xff]
    %v340 = vld [vmem:[#allocation14 + $0x118] sm:$0xff]
    %v341 = vld [vmem:[#allocation14 + $0x120] sm:$0xff]
    %v342 = vld [vmem:[#allocation14 + $0x128] sm:$0xff]
    %v343 = vld [vmem:[#allocation14 + $0x130] sm:$0xff]
    %v344 = vld [vmem:[#allocation14 + $0x138] sm:$0xff]
    %v345 = vld [vmem:[#allocation14 + $0x140] sm:$0xff]
    %v346 = vld [vmem:[#allocation14 + $0x148] sm:$0xff]
    %v347 = vld [vmem:[#allocation14 + $0x150] sm:$0xff]
    %v348 = vld [vmem:[#allocation14 + $0x158] sm:$0xff]
    %v349 = vld [vmem:[#allocation14 + $0x160] sm:$0xff]
    %v350 = vld [vmem:[#allocation14 + $0x168] sm:$0xff]
    %v351 = vld [vmem:[#allocation14 + $0x170] sm:$0xff]
    %v352 = vld [vmem:[#allocation14 + $0x178] sm:$0xff]
    %v353 = vld [vmem:[%s8] sm:$0x1]
    %v354 = vld [vmem:[%s9] sm:$0x1]
    %v355 = vld [vmem:[%s10] sm:$0x1]
    %v356 = vld [vmem:[%s11] sm:$0x1]
    %v357 = vld [vmem:[%s12] sm:$0x7]
    %v358 = vld [vmem:[%s13] sm:$0x7]
    %v359 = vld [vmem:[#allocation7] sm:$0xff]
    %v360 = vld [vmem:[#allocation7 + $0x8] sm:$0xff]
    %v362 = vperm.slane %v353, 0
    %364 = vmatpush.msra.mxu0 %v192
    %365 = vmatpush.msra.mxu0 %v191
    %366 = vmatpush.msra.mxu0 %v190
    %367 = vmatpush.msra.mxu0 %v189
    %368 = vmatpush.msra.mxu0 %v188
    %369 = vmatpush.msra.mxu0 %v187
    %370 = vmatpush.msra.mxu0 %v186
    %371 = vmatpush.msra.mxu0 %v185
    %372 = vmatpush.msra.mxu0 %v184
    %373 = vmatpush.msra.mxu0 %v183
    %374 = vmatpush.msra.mxu0 %v182
    %375 = vmatpush.msra.mxu0 %v181
    %376 = vmatpush.msra.mxu0 %v180
    %377 = vmatpush.msra.mxu0 %v179
    %378 = vmatpush.msra.mxu0 %v178
    %379 = vmatpush.msra.mxu0 %v177
    %380 = vmatmul.f32.gmra.mxu0 %v359
    %v381 = vpop.f32.mrf.mxu0
    %v382 = vadd.f32 %v362, %v381
    %383 = vmatmul.f32.gmra.mxu0 %v360
    %v384 = vpop.f32.mrf.mxu0
    %v385 = vadd.f32 %v362, %v384
    %386 = vdwg.mxu0
    %v388 = vperm.slane %v354, 0
    %390 = vmatpush.msra.mxu0 %v208
    %391 = vmatpush.msra.mxu0 %v207
    %392 = vmatpush.msra.mxu0 %v206
    %393 = vmatpush.msra.mxu0 %v205
    %394 = vmatpush.msra.mxu0 %v204
    %395 = vmatpush.msra.mxu0 %v203
    %396 = vmatpush.msra.mxu0 %v202
    %397 = vmatpush.msra.mxu0 %v201
    %398 = vmatpush.msra.mxu0 %v200
    %399 = vmatpush.msra.mxu0 %v199
    %400 = vmatpush.msra.mxu0 %v198
    %401 = vmatpush.msra.mxu0 %v197
    %402 = vmatpush.msra.mxu0 %v196
    %403 = vmatpush.msra.mxu0 %v195
    %404 = vmatpush.msra.mxu0 %v194
    %405 = vmatpush.msra.mxu0 %v193
    %406 = vmatmul.f32.gmra.mxu0 %v359
    %v407 = vpop.f32.mrf.mxu0
    %v408 = vadd.f32 %v388, %v407
    %409 = vmatmul.f32.gmra.mxu0 %v360
    %v410 = vpop.f32.mrf.mxu0
    %v411 = vadd.f32 %v388, %v410
    %412 = vdwg.mxu0
    %vm413 = vcmask 64512
    %v415 = vsel %vm413, %v173, 0
    %417 = vmatpush.msra.mxu0 0.0
    %418 = vmatpush.msra.mxu0 0.0
    %419 = vmatpush.msra.mxu0 0.0
    %420 = vmatpush.msra.mxu0 0.0
    %421 = vmatpush.msra.mxu0 0.0
    %422 = vmatpush.msra.mxu0 0.0
    %423 = vmatpush.msra.mxu0 0.0
    %424 = vmatpush.msra.mxu0 0.0
    %425 = vmatpush.msra.mxu0 0.0
    %426 = vmatpush.msra.mxu0 0.0
    %427 = vmatpush.msra.mxu0 0.0
    %428 = vmatpush.msra.mxu0 0.0
    %429 = vmatpush.msra.mxu0 0.0
    %430 = vmatpush.msra.mxu0 0.0
    %431 = vmatpush.msra.mxu0 0.0
    %432 = vmatpush.msra.mxu0 %v382
    %433 = vmatmul.f32.gmra.mxu0 %v415
    %v434 = vpop.f32.mrf.mxu0
    %v435 = vadd.f32 0.0, %v434
    %436 = vdwg.mxu0
    %v438 = vsel %vm413, %v174, 0
    %440 = vmatpush.msra.mxu0 0.0
    %441 = vmatpush.msra.mxu0 0.0
    %442 = vmatpush.msra.mxu0 0.0
    %443 = vmatpush.msra.mxu0 0.0
    %444 = vmatpush.msra.mxu0 0.0
    %445 = vmatpush.msra.mxu0 0.0
    %446 = vmatpush.msra.mxu0 0.0
    %447 = vmatpush.msra.mxu0 0.0
    %448 = vmatpush.msra.mxu0 0.0
    %449 = vmatpush.msra.mxu0 0.0
    %450 = vmatpush.msra.mxu0 0.0
    %451 = vmatpush.msra.mxu0 0.0
    %452 = vmatpush.msra.mxu0 0.0
    %453 = vmatpush.msra.mxu0 0.0
    %454 = vmatpush.msra.mxu0 0.0
    %455 = vmatpush.msra.mxu0 %v385
    %456 = vmatmul.f32.gmra.mxu0 %v438
    %v457 = vpop.f32.mrf.mxu0
    %v458 = vadd.f32 0.0, %v457
    %459 = vdwg.mxu0
    %v461 = vperm.slane %v355, 0
    %v463 = vadd.f32 %v435, %v461
    %v464 = vadd.f32 %v458, %v461
    %v466 = vsel %vm413, %v175, 0
    %468 = vmatpush.msra.mxu0 0.0
    %469 = vmatpush.msra.mxu0 0.0
    %470 = vmatpush.msra.mxu0 0.0
    %471 = vmatpush.msra.mxu0 0.0
    %472 = vmatpush.msra.mxu0 0.0
    %473 = vmatpush.msra.mxu0 0.0
    %474 = vmatpush.msra.mxu0 0.0
    %475 = vmatpush.msra.mxu0 0.0
    %476 = vmatpush.msra.mxu0 0.0
    %477 = vmatpush.msra.mxu0 0.0
    %478 = vmatpush.msra.mxu0 0.0
    %479 = vmatpush.msra.mxu0 0.0
    %480 = vmatpush.msra.mxu0 0.0
    %481 = vmatpush.msra.mxu0 0.0
    %482 = vmatpush.msra.mxu0 0.0
    %483 = vmatpush.msra.mxu0 %v408
    %484 = vmatmul.f32.gmra.mxu0 %v466
    %v485 = vpop.f32.mrf.mxu0
    %v486 = vadd.f32 0.0, %v485
    %487 = vdwg.mxu0
    %v489 = vsel %vm413, %v176, 0
    %491 = vmatpush.msra.mxu0 0.0
    %492 = vmatpush.msra.mxu0 0.0
    %493 = vmatpush.msra.mxu0 0.0
    %494 = vmatpush.msra.mxu0 0.0
    %495 = vmatpush.msra.mxu0 0.0
    %496 = vmatpush.msra.mxu0 0.0
    %497 = vmatpush.msra.mxu0 0.0
    %498 = vmatpush.msra.mxu0 0.0
    %499 = vmatpush.msra.mxu0 0.0
    %500 = vmatpush.msra.mxu0 0.0
    %501 = vmatpush.msra.mxu0 0.0
    %502 = vmatpush.msra.mxu0 0.0
    %503 = vmatpush.msra.mxu0 0.0
    %504 = vmatpush.msra.mxu0 0.0
    %505 = vmatpush.msra.mxu0 0.0
    %506 = vmatpush.msra.mxu0 %v411
    %507 = vmatmul.f32.gmra.mxu0 %v489
    %v508 = vpop.f32.mrf.mxu0
    %v509 = vadd.f32 0.0, %v508
    %510 = vdwg.mxu0
    %v512 = vperm.slane %v356, 0
    %v514 = vadd.f32 %v486, %v512
    %v515 = vadd.f32 %v509, %v512
    %516 = vmatpush.msra.mxu0 %v302
    %517 = vmatpush.msra.mxu0 %v299
    %518 = vmatpush.msra.mxu0 %v296
    %519 = vmatpush.msra.mxu0 %v293
    %520 = vmatpush.msra.mxu0 %v290
    %521 = vmatpush.msra.mxu0 %v287
    %522 = vmatpush.msra.mxu0 %v284
    %523 = vmatpush.msra.mxu0 %v281
    %524 = vmatpush.msra.mxu0 %v278
    %525 = vmatpush.msra.mxu0 %v275
    %526 = vmatpush.msra.mxu0 %v272
    %527 = vmatpush.msra.mxu0 %v269
    %528 = vmatpush.msra.mxu0 %v266
    %529 = vmatpush.msra.mxu0 %v263
    %530 = vmatpush.msra.mxu0 %v260
    %531 = vmatpush.msra.mxu0 %v257
    %532 = vmatmul.f32.gmra.mxu0 %v514
    %v533 = vpop.f32.mrf.mxu0
    %v534 = vadd.f32 0.0, %v533
    %535 = vmatmul.f32.gmra.mxu0 %v515
    %v536 = vpop.f32.mrf.mxu0
    %v537 = vadd.f32 0.0, %v536
    %538 = vdwg.mxu0
    %539 = vmatpush.msra.mxu0 %v303
    %540 = vmatpush.msra.mxu0 %v300
    %541 = vmatpush.msra.mxu0 %v297
    %542 = vmatpush.msra.mxu0 %v294
    %543 = vmatpush.msra.mxu0 %v291
    %544 = vmatpush.msra.mxu0 %v288
    %545 = vmatpush.msra.mxu0 %v285
    %546 = vmatpush.msra.mxu0 %v282
    %547 = vmatpush.msra.mxu0 %v279
    %548 = vmatpush.msra.mxu0 %v276
    %549 = vmatpush.msra.mxu0 %v273
    %550 = vmatpush.msra.mxu0 %v270
    %551 = vmatpush.msra.mxu0 %v267
    %552 = vmatpush.msra.mxu0 %v264
    %553 = vmatpush.msra.mxu0 %v261
    %554 = vmatpush.msra.mxu0 %v258
    %555 = vmatmul.f32.gmra.mxu0 %v514
    %v556 = vpop.f32.mrf.mxu0
    %v557 = vadd.f32 0.0, %v556
    %558 = vmatmul.f32.gmra.mxu0 %v515
    %v559 = vpop.f32.mrf.mxu0
    %v560 = vadd.f32 0.0, %v559
    %561 = vdwg.mxu0
    %562 = vmatpush.msra.mxu0 %v304
    %563 = vmatpush.msra.mxu0 %v301
    %564 = vmatpush.msra.mxu0 %v298
    %565 = vmatpush.msra.mxu0 %v295
    %566 = vmatpush.msra.mxu0 %v292
    %567 = vmatpush.msra.mxu0 %v289
    %568 = vmatpush.msra.mxu0 %v286
    %569 = vmatpush.msra.mxu0 %v283
    %570 = vmatpush.msra.mxu0 %v280
    %571 = vmatpush.msra.mxu0 %v277
    %572 = vmatpush.msra.mxu0 %v274
    %573 = vmatpush.msra.mxu0 %v271
    %574 = vmatpush.msra.mxu0 %v268
    %575 = vmatpush.msra.mxu0 %v265
    %576 = vmatpush.msra.mxu0 %v262
    %577 = vmatpush.msra.mxu0 %v259
    %578 = vmatmul.f32.gmra.mxu0 %v514
    %v579 = vpop.f32.mrf.mxu0
    %v580 = vadd.f32 0.0, %v579
    %581 = vmatmul.f32.gmra.mxu0 %v515
    %v582 = vpop.f32.mrf.mxu0
    %v583 = vadd.f32 0.0, %v582
    %584 = vdwg.mxu0
    %585 = vmatpush.msra.mxu0 %v254
    %586 = vmatpush.msra.mxu0 %v251
    %587 = vmatpush.msra.mxu0 %v248
    %588 = vmatpush.msra.mxu0 %v245
    %589 = vmatpush.msra.mxu0 %v242
    %590 = vmatpush.msra.mxu0 %v239
    %591 = vmatpush.msra.mxu0 %v236
    %592 = vmatpush.msra.mxu0 %v233
    %593 = vmatpush.msra.mxu0 %v230
    %594 = vmatpush.msra.mxu0 %v227
    %595 = vmatpush.msra.mxu0 %v224
    %596 = vmatpush.msra.mxu0 %v221
    %597 = vmatpush.msra.mxu0 %v218
    %598 = vmatpush.msra.mxu0 %v215
    %599 = vmatpush.msra.mxu0 %v212
    %600 = vmatpush.msra.mxu0 %v209
    %601 = vmatmul.f32.gmra.mxu0 %v463
    %v602 = vpop.f32.mrf.mxu0
    %v603 = vadd.f32 %v534, %v602
    %604 = vmatmul.f32.gmra.mxu0 %v464
    %v605 = vpop.f32.mrf.mxu0
    %v606 = vadd.f32 %v537, %v605
    %607 = vdwg.mxu0
    %608 = vmatpush.msra.mxu0 %v255
    %609 = vmatpush.msra.mxu0 %v252
    %610 = vmatpush.msra.mxu0 %v249
    %611 = vmatpush.msra.mxu0 %v246
    %612 = vmatpush.msra.mxu0 %v243
    %613 = vmatpush.msra.mxu0 %v240
    %614 = vmatpush.msra.mxu0 %v237
    %615 = vmatpush.msra.mxu0 %v234
    %616 = vmatpush.msra.mxu0 %v231
    %617 = vmatpush.msra.mxu0 %v228
    %618 = vmatpush.msra.mxu0 %v225
    %619 = vmatpush.msra.mxu0 %v222
    %620 = vmatpush.msra.mxu0 %v219
    %621 = vmatpush.msra.mxu0 %v216
    %622 = vmatpush.msra.mxu0 %v213
    %623 = vmatpush.msra.mxu0 %v210
    %624 = vmatmul.f32.gmra.mxu0 %v463
    %v625 = vpop.f32.mrf.mxu0
    %v626 = vadd.f32 %v557, %v625
    %627 = vmatmul.f32.gmra.mxu0 %v464
    %v628 = vpop.f32.mrf.mxu0
    %v629 = vadd.f32 %v560, %v628
    %630 = vdwg.mxu0
    %631 = vmatpush.msra.mxu0 %v256
    %632 = vmatpush.msra.mxu0 %v253
    %633 = vmatpush.msra.mxu0 %v250
    %634 = vmatpush.msra.mxu0 %v247
    %635 = vmatpush.msra.mxu0 %v244
    %636 = vmatpush.msra.mxu0 %v241
    %637 = vmatpush.msra.mxu0 %v238
    %638 = vmatpush.msra.mxu0 %v235
    %639 = vmatpush.msra.mxu0 %v232
    %640 = vmatpush.msra.mxu0 %v229
    %641 = vmatpush.msra.mxu0 %v226
    %642 = vmatpush.msra.mxu0 %v223
    %643 = vmatpush.msra.mxu0 %v220
    %644 = vmatpush.msra.mxu0 %v217
    %645 = vmatpush.msra.mxu0 %v214
    %646 = vmatpush.msra.mxu0 %v211
    %647 = vmatmul.f32.gmra.mxu0 %v463
    %v648 = vpop.f32.mrf.mxu0
    %v649 = vadd.f32 %v580, %v648
    %650 = vmatmul.f32.gmra.mxu0 %v464
    %v651 = vpop.f32.mrf.mxu0
    %v652 = vadd.f32 %v583, %v651
    %653 = vdwg.mxu0
    %v655 = vperm.slane %v357, 0
    %v656 = vperm.slane %v357, 1
    %v657 = vperm.slane %v357, 2
    %v661 = vadd.f32 %v603, %v655
    %v662 = vadd.f32 %v626, %v656
    %v663 = vadd.f32 %v649, %v657
    %v664 = vadd.f32 %v606, %v655
    %v665 = vadd.f32 %v629, %v656
    %v666 = vadd.f32 %v652, %v657
    %v668 = vperm.slane %v358, 0
    %v669 = vperm.slane %v358, 1
    %v670 = vperm.slane %v358, 2
    %674 = vmatpush.msra.mxu0 %v350
    %675 = vmatpush.msra.mxu0 %v347
    %676 = vmatpush.msra.mxu0 %v344
    %677 = vmatpush.msra.mxu0 %v341
    %678 = vmatpush.msra.mxu0 %v338
    %679 = vmatpush.msra.mxu0 %v335
    %680 = vmatpush.msra.mxu0 %v332
    %681 = vmatpush.msra.mxu0 %v329
    %682 = vmatpush.msra.mxu0 %v326
    %683 = vmatpush.msra.mxu0 %v323
    %684 = vmatpush.msra.mxu0 %v320
    %685 = vmatpush.msra.mxu0 %v317
    %686 = vmatpush.msra.mxu0 %v314
    %687 = vmatpush.msra.mxu0 %v311
    %688 = vmatpush.msra.mxu0 %v308
    %689 = vmatpush.msra.mxu0 %v305
    %690 = vmatmul.f32.gmra.mxu0 %v359
    %v691 = vpop.f32.mrf.mxu0
    %v692 = vadd.f32 %v668, %v691
    %693 = vmatmul.f32.gmra.mxu0 %v360
    %v694 = vpop.f32.mrf.mxu0
    %v695 = vadd.f32 %v668, %v694
    %696 = vdwg.mxu0
    %697 = vmatpush.msra.mxu0 %v351
    %698 = vmatpush.msra.mxu0 %v348
    %699 = vmatpush.msra.mxu0 %v345
    %700 = vmatpush.msra.mxu0 %v342
    %701 = vmatpush.msra.mxu0 %v339
    %702 = vmatpush.msra.mxu0 %v336
    %703 = vmatpush.msra.mxu0 %v333
    %704 = vmatpush.msra.mxu0 %v330
    %705 = vmatpush.msra.mxu0 %v327
    %706 = vmatpush.msra.mxu0 %v324
    %707 = vmatpush.msra.mxu0 %v321
    %708 = vmatpush.msra.mxu0 %v318
    %709 = vmatpush.msra.mxu0 %v315
    %710 = vmatpush.msra.mxu0 %v312
    %711 = vmatpush.msra.mxu0 %v309
    %712 = vmatpush.msra.mxu0 %v306
    %713 = vmatmul.f32.gmra.mxu0 %v359
    %v714 = vpop.f32.mrf.mxu0
    %v715 = vadd.f32 %v669, %v714
    %716 = vmatmul.f32.gmra.mxu0 %v360
    %v717 = vpop.f32.mrf.mxu0
    %v718 = vadd.f32 %v669, %v717
    %719 = vdwg.mxu0
    %720 = vmatpush.msra.mxu0 %v352
    %721 = vmatpush.msra.mxu0 %v349
    %722 = vmatpush.msra.mxu0 %v346
    %723 = vmatpush.msra.mxu0 %v343
    %724 = vmatpush.msra.mxu0 %v340
    %725 = vmatpush.msra.mxu0 %v337
    %726 = vmatpush.msra.mxu0 %v334
    %727 = vmatpush.msra.mxu0 %v331
    %728 = vmatpush.msra.mxu0 %v328
    %729 = vmatpush.msra.mxu0 %v325
    %730 = vmatpush.msra.mxu0 %v322
    %731 = vmatpush.msra.mxu0 %v319
    %732 = vmatpush.msra.mxu0 %v316
    %733 = vmatpush.msra.mxu0 %v313
    %734 = vmatpush.msra.mxu0 %v310
    %735 = vmatpush.msra.mxu0 %v307
    %736 = vmatmul.f32.gmra.mxu0 %v359
    %v737 = vpop.f32.mrf.mxu0
    %v738 = vadd.f32 %v670, %v737
    %739 = vmatmul.f32.gmra.mxu0 %v360
    %v740 = vpop.f32.mrf.mxu0
    %v741 = vadd.f32 %v670, %v740
    %742 = vdwg.mxu0
    %v743 = vadd.f32 %v661, %v692
    %v744 = vadd.f32 %v664, %v695
    %v745 = vxor.u32 %v743, 2147483648
    %v746 = vxor.u32 %v744, 2147483648
    %v747 = vmul.f32 %v745, 1.442695
    %v748 = vpow.pop %v747
    %v749 = vmul.f32 %v746, 1.442695
    %v750 = vpow.pop %v749
    %v751 = vadd.f32 %v748, 1.0
    %v752 = vadd.f32 %v750, 1.0
    %v753 = vrcp.pop %v751
    %v754 = vmul.f32 %v751, %v753
    %v755 = vsub.f32 1.0, %v754
    %v756 = vmul.f32 %v753, %v755
    %v757 = vadd.f32 %v753, %v756
    %vm758 = vweird.f32 %v751
    %vm759 = vweird.f32 %v753
    %vm760 = vmor %vm758, %vm759
    %v761 = vsel %vm760, %v753, %v757
    %v762 = vand.u32 2147483647, %v751
    %vm763 = vcmp.eq.f32.partialorder %v762, 8.507059e+37
    %v764 = vand.u32 %v751, 2147483648
    %v765 = vor.u32 1.1754944e-38, %v764
    %v766 = vsel %vm763, %v765, %v761
    %v767 = vmul.f32 1.0, %v766
    %v768 = vrcp.pop %v752
    %v769 = vmul.f32 %v752, %v768
    %v770 = vsub.f32 1.0, %v769
    %v771 = vmul.f32 %v768, %v770
    %v772 = vadd.f32 %v768, %v771
    %vm773 = vweird.f32 %v752
    %vm774 = vweird.f32 %v768
    %vm775 = vmor %vm773, %vm774
    %v776 = vsel %vm775, %v768, %v772
    %v777 = vand.u32 2147483647, %v752
    %vm778 = vcmp.eq.f32.partialorder %v777, 8.507059e+37
    %v779 = vand.u32 %v752, 2147483648
    %v780 = vor.u32 1.1754944e-38, %v779
    %v781 = vsel %vm778, %v780, %v776
    %v782 = vmul.f32 1.0, %v781
    %v783 = vadd.f32 %v662, %v715
    %v784 = vadd.f32 %v665, %v718
    %v785 = vxor.u32 %v783, 2147483648
    %v786 = vxor.u32 %v784, 2147483648
    %v787 = vmul.f32 %v785, 1.442695
    %v788 = vpow.pop %v787
    %v789 = vmul.f32 %v786, 1.442695
    %v790 = vpow.pop %v789
    %v791 = vadd.f32 %v788, 1.0
    %v792 = vadd.f32 %v790, 1.0
    %v793 = vrcp.pop %v791
    %v794 = vmul.f32 %v791, %v793
    %v795 = vsub.f32 1.0, %v794
    %v796 = vmul.f32 %v793, %v795
    %v797 = vadd.f32 %v793, %v796
    %vm798 = vweird.f32 %v791
    %vm799 = vweird.f32 %v793
    %vm800 = vmor %vm798, %vm799
    %v801 = vsel %vm800, %v793, %v797
    %v802 = vand.u32 2147483647, %v791
    %vm803 = vcmp.eq.f32.partialorder %v802, 8.507059e+37
    %v804 = vand.u32 %v791, 2147483648
    %v805 = vor.u32 1.1754944e-38, %v804
    %v806 = vsel %vm803, %v805, %v801
    %v807 = vmul.f32 1.0, %v806
    %v808 = vrcp.pop %v792
    %v809 = vmul.f32 %v792, %v808
    %v810 = vsub.f32 1.0, %v809
    %v811 = vmul.f32 %v808, %v810
    %v812 = vadd.f32 %v808, %v811
    %vm813 = vweird.f32 %v792
    %vm814 = vweird.f32 %v808
    %vm815 = vmor %vm813, %vm814
    %v816 = vsel %vm815, %v808, %v812
    %v817 = vand.u32 2147483647, %v792
    %vm818 = vcmp.eq.f32.partialorder %v817, 8.507059e+37
    %v819 = vand.u32 %v792, 2147483648
    %v820 = vor.u32 1.1754944e-38, %v819
    %v821 = vsel %vm818, %v820, %v816
    %v822 = vmul.f32 1.0, %v821
    %v823 = vmul.f32 %v767, %v738
    %v824 = vmul.f32 %v782, %v741
    %v825 = vadd.f32 %v663, %v823
    %v826 = vadd.f32 %v666, %v824
    %v827 = vtanh.pop %v825
    %v828 = vtanh.pop %v826
    %v829 = vsub.f32 %v359, %v827
    %v830 = vsub.f32 %v360, %v828
    %v831 = vmul.f32 %v807, %v829
    %v832 = vmul.f32 %v822, %v830
    %v833 = vadd.f32 %v827, %v831
    %v834 = vadd.f32 %v828, %v832
    %835 = vst [vmem:[#allocation16] sm:$0xff] %v833
    %836 = vst [vmem:[#allocation16 + $0x8] sm:$0xff] %v834
    // Predicated region
    $region90: #{tpu_custom_call.1} parent=1 // pred_check
      _
    $region91: #{tpu_custom_call.1} parent=1 // pred_check_branch
      %838 = sbr.rel (0) target = $region93
    $region92: #{tpu_custom_call.1} parent=1 // pred_region
      %840 = vsyncadd [#allocation4], 0
      %s841 = sshll.u32 [#allocation16], 4
      %s842 = int_to_ptr.vmem [resolvable:$true] %s841
      %s843 = sshll.u32 %s14, 4
      %s844 = int_to_ptr.hbm [resolvable:$true] %s843
      %849 = dma.vmem_to_hbm [thread:$0]  %s842, 256, %s844, [#allocation4], 128, 128, 8
    $region93: #{tpu_custom_call.1} parent=1 // pred_fallthru
      _
    // Predicated region
    $region94: #{tpu_custom_call.1} parent=1 // pred_check
      _
    $region95: #{tpu_custom_call.1} parent=1 // pred_check_branch
      %851 = sbr.rel (0) target = $region97
    $region96: #{tpu_custom_call.1} parent=1 // pred_region
      %853 = dma.done [#allocation4], 256
    $region97: #{tpu_custom_call.1} parent=1 // pred_fallthru
      _
    %854 = vsyncpa [#allocation3], 1
    %855 = vsyncpa [#allocation6], 1
    %856 = vsyncpa [#allocation9], 1
    %857 = vsyncpa [#allocation12], 1
    %858 = vsyncpa [#allocation15], 1
    %859 = vsyncpa [#allocation4], 1

</llo_original>
